<compile_context>
chip_gen: v6e
topology: v6e:2x2x1
jax: 0.10.0
libtpu: 0.0.40
codegen_flags: <defaults>
</compile_context>

<pallas_src>
import jax
import jax.numpy as jnp
from jax.experimental import pallas as pl
from jax.experimental.pallas import tpu as pltpu


def critic_kernel(x_ref, w1_ref, b1_ref, w2_ref, b2_ref, w3_ref, b3_ref, q_ref):
    # Layer 1: (hidden, in_dim) @ (in_dim, TM) on the MXU, bf16 inputs, f32 accumulation.
    h1 = jnp.dot(w1_ref[...], x_ref[...],
                 preferred_element_type=jnp.float32) + b1_ref[...]
    h1 = jnp.maximum(h1, 0.0)

    # Layer 2: (hidden, hidden) @ (hidden, TM) on the MXU (dominant cost).
    h2 = jnp.dot(w2_ref[...], h1.astype(jnp.bfloat16),
                 preferred_element_type=jnp.float32) + b2_ref[...]
    h2 = jnp.maximum(h2, 0.0)

    # Layer 3 (output width 1): VPU multiply + cross-sublane reduce (XLU) -> lane-dense
    # (1, TM) row; keeps the MXU free and the store epilogue unmasked.
    q = jnp.sum(h2 * w3_ref[...], axis=0, keepdims=True) + b3_ref[...]
    q_ref[...] = q.astype(q_ref.dtype)


def _choose_tm(batch, cap=512):
    """Lane-dense batch tile: multiple of 128 (256 preferred); >=2 steps for big batches."""
    if batch <= 128:
        return 128
    if batch < 512:
        return 256
    # Guarantee at least 2 grid steps so the "parallel" axis feeds both v7x TensorCores.
    return max(256, min(cap, ((batch // 2) // 256) * 256))


def critic_forward(obs, action, params, *, tm_cap=512):
    """obs: (B, obs_dim) f32, action: (B, action_dim) f32 -> (B, 1) f32."""
    w1, b1, w2, b2, w3, b3 = params
    B = obs.shape[0]
    in_dim = obs.shape[1] + action.shape[1]
    hidden = w1.shape[1]

    TM = _choose_tm(B, tm_cap)
    Bp = ((B + TM - 1) // TM) * TM
    G = Bp // TM

    # Single concatenated activation slab (one MXU push for layer 1); pad the batch,
    # transpose so batch sits on lanes, and cast to bf16 (halves activation DMA bytes).
    x = jnp.concatenate([obs, action], axis=-1)                  # (B, in_dim) f32
    if Bp != B:
        x = jnp.pad(x, ((0, Bp - B), (0, 0)))
    x_t = x.T.astype(jnp.bfloat16)                               # (in_dim, Bp) bf16

    # Kernel-layout parameters (wrapper-side prep; weights bf16 for the MXU, biases and
    # the tiny layer-3 vector stay f32 since that layer runs on the VPU/XLU).
    w1_t = w1.T.astype(jnp.bfloat16)                             # (hidden, in_dim)
    w2_t = w2.T.astype(jnp.bfloat16)                             # (hidden, hidden)
    b1_c = b1.reshape(hidden, 1).astype(jnp.float32)
    b2_c = b2.reshape(hidden, 1).astype(jnp.float32)
    w3_c = w3.reshape(hidden, 1).astype(jnp.float32)
    b3_c = b3.reshape(1, 1).astype(jnp.float32)

    def resident(arr):
        # Weight / bias stays pinned in VMEM for every grid step.
        return pl.BlockSpec(arr.shape, lambda i: (0, 0))

    q_rows = pl.pallas_call(
        critic_kernel,
        out_shape=jax.ShapeDtypeStruct((1, Bp), jnp.float32),
        grid=(G,),
        in_specs=[
            pl.BlockSpec((in_dim, TM), lambda i: (0, i)),        # activation tile
            resident(w1_t), resident(b1_c),
            resident(w2_t), resident(b2_c),
            resident(w3_c), resident(b3_c),
        ],
        out_specs=pl.BlockSpec((1, TM), lambda i: (0, i)),       # lane-dense output row
        compiler_params=pltpu.CompilerParams(
            dimension_semantics=("parallel",),
            vmem_limit_bytes=32 * 1024 * 1024),
    )(x_t, w1_t, b1_c, w2_t, b2_c, w3_c, b3_c)

    return q_rows[0, :B].reshape(B, 1)


def init_critic_params(key, obs_dim, action_dim, hidden_dim):
    """PyTorch nn.Linear-style init: U(-1/sqrt(fan_in), +1/sqrt(fan_in)), natural layout."""
    def linear(k, fan_in, fan_out):
        kw, kb = jax.random.split(k)
        bound = 1.0 / jnp.sqrt(fan_in)
        w = jax.random.uniform(kw, (fan_in, fan_out), jnp.float32, -bound, bound)
        b = jax.random.uniform(kb, (fan_out,), jnp.float32, -bound, bound)
        return w, b

    k1, k2, k3 = jax.random.split(key, 3)
    w1, b1 = linear(k1, obs_dim + action_dim, hidden_dim)
    w2, b2 = linear(k2, hidden_dim, hidden_dim)
    w3, b3 = linear(k3, hidden_dim, 1)
    return (w1, b1, w2, b2, w3, b3)


def critic_reference(obs, action, params):
    """Pure-JAX f32 reference, matching the PyTorch module exactly."""
    w1, b1, w2, b2, w3, b3 = params
    x = jnp.concatenate([obs, action], axis=-1)
    h1 = jnp.maximum(x @ w1 + b1, 0.0)
    h2 = jnp.maximum(h1 @ w2 + b2, 0.0)
    return h2 @ w3 + b3


if __name__ == "__main__":
    B, OBS_DIM, ACT_DIM, HIDDEN = 64, 16, 8, 256   # hidden=256 is the module default (MXU-aligned)

    key = jax.random.PRNGKey(0)
    k_obs, k_act, k_params = jax.random.split(key, 3)

    obs = jax.random.normal(k_obs, (B, OBS_DIM), jnp.float32)
    action = jax.random.normal(k_act, (B, ACT_DIM), jnp.float32)
    params = init_critic_params(k_params, OBS_DIM, ACT_DIM, HIDDEN)

    q = jax.block_until_ready(critic_forward(obs, action, params))
    q_ref = critic_reference(obs, action, params)

    assert q.shape == (B, 1), q.shape
    # bf16 MXU inputs with f32 accumulation -> loosened tolerance vs the f32 reference.
    assert jnp.allclose(q, q_ref, atol=2e-2, rtol=2e-2), \
        f"max abs err = {float(jnp.max(jnp.abs(q - q_ref)))}"

    print("KERNEL_OK")
</pallas_src>

<mosaic_0001>
module attributes {stable_mosaic.version = 11 : i64} {
  func.func @critic_kernel(%arg0: i32, %arg1: memref<24x128xbf16, #tpu.memory_space<vmem>>, %arg2: memref<256x24xbf16, #tpu.memory_space<vmem>>, %arg3: memref<256x1xf32, #tpu.memory_space<vmem>>, %arg4: memref<256x256xbf16, #tpu.memory_space<vmem>>, %arg5: memref<256x1xf32, #tpu.memory_space<vmem>>, %arg6: memref<256x1xf32, #tpu.memory_space<vmem>>, %arg7: memref<1x1xf32, #tpu.memory_space<vmem>>, %arg8: memref<1x128xf32, #tpu.memory_space<vmem>>) attributes {dimension_semantics = [#tpu.dimension_semantics<parallel>], iteration_bounds = array<i64: 1>, scalar_prefetch = 0 : i64, scratch_operands = 0 : i64, tpu.core_type = #tpu.core_type<tc>, window_params = [{transform_indices = @transform_0, window_bounds = array<i64: 24, 128>}, {pipeline_mode = #tpu.pipeline_mode<synchronous>, transform_indices = @transform_1, window_bounds = array<i64: 256, 24>}, {pipeline_mode = #tpu.pipeline_mode<synchronous>, transform_indices = @transform_2, window_bounds = array<i64: 256, 1>}, {pipeline_mode = #tpu.pipeline_mode<synchronous>, transform_indices = @transform_3, window_bounds = array<i64: 256, 256>}, {pipeline_mode = #tpu.pipeline_mode<synchronous>, transform_indices = @transform_4, window_bounds = array<i64: 256, 1>}, {pipeline_mode = #tpu.pipeline_mode<synchronous>, transform_indices = @transform_5, window_bounds = array<i64: 256, 1>}, {pipeline_mode = #tpu.pipeline_mode<synchronous>, transform_indices = @transform_6, window_bounds = array<i64: 1, 1>}, {transform_indices = @transform_7, window_bounds = array<i64: 1, 128>}]} {
    %c0 = arith.constant 0 : index
    %c0_0 = arith.constant 0 : index
    %0 = vector.load %arg2[%c0, %c0_0] : memref<256x24xbf16, #tpu.memory_space<vmem>>, vector<256x24xbf16>
    %c0_1 = arith.constant 0 : index
    %c0_2 = arith.constant 0 : index
    %1 = vector.load %arg1[%c0_1, %c0_2] : memref<24x128xbf16, #tpu.memory_space<vmem>>, vector<24x128xbf16>
    %cst = arith.constant dense<0.000000e+00> : vector<256x128xf32>
    %2 = tpu.matmul %0, %1, %cst {dimension_numbers = #tpu.dot_dimension_numbers<[1], [0], [0], [1], [0, 0, 1, 1], [], []>} : vector<256x24xbf16>, vector<24x128xbf16>, vector<256x128xf32> -> vector<256x128xf32>
    %c0_3 = arith.constant 0 : index
    %c0_4 = arith.constant 0 : index
    %3 = vector.load %arg3[%c0_3, %c0_4] : memref<256x1xf32, #tpu.memory_space<vmem>>, vector<256x1xf32>
    %4 = vector.broadcast %3 : vector<256x1xf32> to vector<256x128xf32>
    %5 = arith.addf %2, %4 : vector<256x128xf32>
    %cst_5 = arith.constant 0.000000e+00 : f32
    %6 = vector.broadcast %cst_5 : f32 to vector<256x128xf32>
    %7 = arith.maximumf %5, %6 : vector<256x128xf32>
    %c0_6 = arith.constant 0 : index
    %c0_7 = arith.constant 0 : index
    %8 = vector.load %arg4[%c0_6, %c0_7] : memref<256x256xbf16, #tpu.memory_space<vmem>>, vector<256x256xbf16>
    %9 = arith.truncf %7 : vector<256x128xf32> to vector<256x128xbf16>
    %cst_8 = arith.constant dense<0.000000e+00> : vector<256x128xf32>
    %10 = tpu.matmul %8, %9, %cst_8 {dimension_numbers = #tpu.dot_dimension_numbers<[1], [0], [0], [1], [0, 0, 1, 1], [], []>} : vector<256x256xbf16>, vector<256x128xbf16>, vector<256x128xf32> -> vector<256x128xf32>
    %c0_9 = arith.constant 0 : index
    %c0_10 = arith.constant 0 : index
    %11 = vector.load %arg5[%c0_9, %c0_10] : memref<256x1xf32, #tpu.memory_space<vmem>>, vector<256x1xf32>
    %12 = vector.broadcast %11 : vector<256x1xf32> to vector<256x128xf32>
    %13 = arith.addf %10, %12 : vector<256x128xf32>
    %cst_11 = arith.constant 0.000000e+00 : f32
    %14 = vector.broadcast %cst_11 : f32 to vector<256x128xf32>
    %15 = arith.maximumf %13, %14 : vector<256x128xf32>
    %c0_12 = arith.constant 0 : index
    %c0_13 = arith.constant 0 : index
    %16 = vector.load %arg6[%c0_12, %c0_13] : memref<256x1xf32, #tpu.memory_space<vmem>>, vector<256x1xf32>
    %17 = vector.broadcast %16 : vector<256x1xf32> to vector<256x128xf32>
    %18 = arith.mulf %15, %17 : vector<256x128xf32>
    %cst_14 = arith.constant dense<0.000000e+00> : vector<128xf32>
    %19 = vector.multi_reduction <add>, %18, %cst_14 [0] : vector<256x128xf32> to vector<128xf32>
    %20 = vector.shape_cast %19 : vector<128xf32> to vector<1x128xf32>
    %c0_15 = arith.constant 0 : index
    %c0_16 = arith.constant 0 : index
    %21 = vector.load %arg7[%c0_15, %c0_16] : memref<1x1xf32, #tpu.memory_space<vmem>>, vector<1x1xf32>
    %22 = vector.broadcast %21 : vector<1x1xf32> to vector<1x128xf32>
    %23 = arith.addf %20, %22 : vector<1x128xf32>
    %c0_17 = arith.constant 0 : index
    %c0_18 = arith.constant 0 : index
    %24 = vector.load %arg8[%c0_17, %c0_18] : memref<1x128xf32, #tpu.memory_space<vmem>>, vector<1x128xf32>
    tpu.vector_store %arg8[%c0_17, %c0_18], %23 {strides = array<i32>} : memref<1x128xf32, #tpu.memory_space<vmem>>, vector<1x128xf32>,
    return
  }
  func.func @transform_0(%arg0: i32) -> (i32, i32) {
    %c0_i32 = arith.constant 0 : i32
    %c0_i32_0 = arith.constant 0 : i32
    return %c0_i32, %arg0 : i32, i32
  }
  func.func @transform_1(%arg0: i32) -> (i32, i32) {
    %c0_i32 = arith.constant 0 : i32
    %c0_i32_0 = arith.constant 0 : i32
    %c0_i32_1 = arith.constant 0 : i32
    return %c0_i32, %c0_i32_0 : i32, i32
  }
  func.func @transform_2(%arg0: i32) -> (i32, i32) {
    %c0_i32 = arith.constant 0 : i32
    %c0_i32_0 = arith.constant 0 : i32
    %c0_i32_1 = arith.constant 0 : i32
    return %c0_i32, %c0_i32_0 : i32, i32
  }
  func.func @transform_3(%arg0: i32) -> (i32, i32) {
    %c0_i32 = arith.constant 0 : i32
    %c0_i32_0 = arith.constant 0 : i32
    %c0_i32_1 = arith.constant 0 : i32
    return %c0_i32, %c0_i32_0 : i32, i32
  }
  func.func @transform_4(%arg0: i32) -> (i32, i32) {
    %c0_i32 = arith.constant 0 : i32
    %c0_i32_0 = arith.constant 0 : i32
    %c0_i32_1 = arith.constant 0 : i32
    return %c0_i32, %c0_i32_0 : i32, i32
  }
  func.func @transform_5(%arg0: i32) -> (i32, i32) {
    %c0_i32 = arith.constant 0 : i32
    %c0_i32_0 = arith.constant 0 : i32
    %c0_i32_1 = arith.constant 0 : i32
    return %c0_i32, %c0_i32_0 : i32, i32
  }
  func.func @transform_6(%arg0: i32) -> (i32, i32) {
    %c0_i32 = arith.constant 0 : i32
    %c0_i32_0 = arith.constant 0 : i32
    %c0_i32_1 = arith.constant 0 : i32
    return %c0_i32, %c0_i32_0 : i32, i32
  }
  func.func @transform_7(%arg0: i32) -> (i32, i32) {
    %c0_i32 = arith.constant 0 : i32
    %c0_i32_0 = arith.constant 0 : i32
    return %c0_i32, %arg0 : i32, i32
  }
}

</mosaic_0001>

<llo_original>
// kernel: tpu_custom_call.1
$region0: #{tpu_custom_call.1}
  #allocation0 [shape = 'u32[]', space=smem, size = 0x4, offset = 0x4, fixed_abs, tag = 'smem constant byte address 0x4 - core index']
  #allocation1 [shape = 'u32[144,128]{1,0:T(1,128)}', space=vmem, size = 0x12000, scoped, tag = 'internal scratch']
  #allocation2 [shape = 'f32[1,1]{1,0:T(1,128)S(1)}', space=vmem, size = 0x200, scoped, tag = 'scoped memory for tpu_custom_call.1']
  %s0 = inlined_call_operand.vmem [shape: bf16[24,128], index: 0, kind: input, shape index: {}]
  %s1 = inlined_call_operand.vmem [shape: bf16[256,24], index: 1, kind: input, shape index: {}]
  %s2 = inlined_call_operand.vmem [shape: f32[256,1], index: 2, kind: input, shape index: {}]
  %s3 = inlined_call_operand.vmem [shape: bf16[256,256], index: 3, kind: input, shape index: {}]
  %s4 = inlined_call_operand.vmem [shape: f32[256,1], index: 4, kind: input, shape index: {}]
  %s5 = inlined_call_operand.vmem [shape: f32[256,1], index: 5, kind: input, shape index: {}]
  %s6 = inlined_call_operand.<no memory space> [shape: f32[1,1], index: 6, kind: input, shape index: {}]
  %s7 = inlined_call_operand.hbm [shape: f32[1,128], index: 7, kind: output, shape index: {}]
  %s8 = sld [smem:[#allocation0]]
  $region38: #{tpu_custom_call.1} parent=0
    _
  %s10 = ssub.s32 1, %s8
  %s11 = scalar_select 0, %s10, %s8
  %v12 = vstv %s6
  %13 = vst [vmem:[#allocation2] sm:$0x1] %v12
  $region1: #{tpu_custom_call.1} parent=0
    #allocation3 [shape = 'u8[512]{0}', space=vmem, size = 0x400, scoped, tag = 'output window, operand 0, single buffered']
    #allocation4 [shape = 's32[1]{0}', space=sflag, size = 0x4, scoped, tag = 'scoped memory for tpu_custom_call.1']
    %14 = vsyncpa [#allocation4], 0
    // Predicated region
    $region2: #{tpu_custom_call.1} parent=1 // pred_check
      _
    $region3: #{tpu_custom_call.1} parent=1 // pred_check_branch
      %16 = sbr.rel (0) target = $region5
    $region4: #{tpu_custom_call.1} parent=1 // pred_region
      _
    $region5: #{tpu_custom_call.1} parent=1 // pred_fallthru
      _
    // Predicated region
    $region6: #{tpu_custom_call.1} parent=1 // pred_check
      _
    $region7: #{tpu_custom_call.1} parent=1 // pred_check_branch
      %18 = sbr.rel (0) target = $region9
    $region8: #{tpu_custom_call.1} parent=1 // pred_region
      _
    $region9: #{tpu_custom_call.1} parent=1 // pred_fallthru
      _
    // Predicated region
    $region10: #{tpu_custom_call.1} parent=1 // pred_check
      _
    $region11: #{tpu_custom_call.1} parent=1 // pred_check_branch
      %20 = sbr.rel (0) target = $region13
    $region12: #{tpu_custom_call.1} parent=1 // pred_region
      _
    $region13: #{tpu_custom_call.1} parent=1 // pred_fallthru
      _
    // Predicated region
    $region14: #{tpu_custom_call.1} parent=1 // pred_check
      _
    $region15: #{tpu_custom_call.1} parent=1 // pred_check_branch
      %22 = sbr.rel (0) target = $region17
    $region16: #{tpu_custom_call.1} parent=1 // pred_region
      _
    $region17: #{tpu_custom_call.1} parent=1 // pred_fallthru
      _
    // Predicated region
    $region18: #{tpu_custom_call.1} parent=1 // pred_check
      _
    $region19: #{tpu_custom_call.1} parent=1 // pred_check_branch
      %24 = sbr.rel (0) target = $region21
    $region20: #{tpu_custom_call.1} parent=1 // pred_region
      _
    $region21: #{tpu_custom_call.1} parent=1 // pred_fallthru
      _
    // Predicated region
    $region22: #{tpu_custom_call.1} parent=1 // pred_check
      _
    $region23: #{tpu_custom_call.1} parent=1 // pred_check_branch
      %26 = sbr.rel (0) target = $region25
    $region24: #{tpu_custom_call.1} parent=1 // pred_region
      _
    $region25: #{tpu_custom_call.1} parent=1 // pred_fallthru
      _
    // Predicated region
    $region26: #{tpu_custom_call.1} parent=1 // pred_check
      _
    $region27: #{tpu_custom_call.1} parent=1 // pred_check_branch
      %28 = sbr.rel (0) target = $region29
    $region28: #{tpu_custom_call.1} parent=1 // pred_region
      _
    $region29: #{tpu_custom_call.1} parent=1 // pred_fallthru
      _
    %v30 = vld [vmem:[%s1] sm:$0xf]
    %v31 = vld [vmem:[%s1 + $0x4] sm:$0xf]
    %v32 = vld [vmem:[%s1 + $0x8] sm:$0xf]
    %v33 = vld [vmem:[%s1 + $0xc] sm:$0xf]
    %v34 = vld [vmem:[%s1 + $0x10] sm:$0xf]
    %v35 = vld [vmem:[%s1 + $0x14] sm:$0xf]
    %v36 = vld [vmem:[%s1 + $0x18] sm:$0xf]
    %v37 = vld [vmem:[%s1 + $0x1c] sm:$0xf]
    %v38 = vld [vmem:[%s1 + $0x20] sm:$0xf]
    %v39 = vld [vmem:[%s1 + $0x24] sm:$0xf]
    %v40 = vld [vmem:[%s1 + $0x28] sm:$0xf]
    %v41 = vld [vmem:[%s1 + $0x2c] sm:$0xf]
    %v42 = vld [vmem:[%s1 + $0x30] sm:$0xf]
    %v43 = vld [vmem:[%s1 + $0x34] sm:$0xf]
    %v44 = vld [vmem:[%s1 + $0x38] sm:$0xf]
    %v45 = vld [vmem:[%s1 + $0x3c] sm:$0xf]
    %v46 = vld [vmem:[%s1 + $0x40] sm:$0xf]
    %v47 = vld [vmem:[%s1 + $0x44] sm:$0xf]
    %v48 = vld [vmem:[%s1 + $0x48] sm:$0xf]
    %v49 = vld [vmem:[%s1 + $0x4c] sm:$0xf]
    %v50 = vld [vmem:[%s1 + $0x50] sm:$0xf]
    %v51 = vld [vmem:[%s1 + $0x54] sm:$0xf]
    %v52 = vld [vmem:[%s1 + $0x58] sm:$0xf]
    %v53 = vld [vmem:[%s1 + $0x5c] sm:$0xf]
    %v54 = vld [vmem:[%s1 + $0x60] sm:$0xf]
    %v55 = vld [vmem:[%s1 + $0x64] sm:$0xf]
    %v56 = vld [vmem:[%s1 + $0x68] sm:$0xf]
    %v57 = vld [vmem:[%s1 + $0x6c] sm:$0xf]
    %v58 = vld [vmem:[%s1 + $0x70] sm:$0xf]
    %v59 = vld [vmem:[%s1 + $0x74] sm:$0xf]
    %v60 = vld [vmem:[%s1 + $0x78] sm:$0xf]
    %v61 = vld [vmem:[%s1 + $0x7c] sm:$0xf]
    %v62 = vld [vmem:[%s0] sm:$0xf]
    %v63 = vld [vmem:[%s0 + $0x4] sm:$0xf]
    %v64 = vld [vmem:[%s0 + $0x8] sm:$0xf]
    %v65 = vld [vmem:[%s2] sm:$0xff]
    %v66 = vld [vmem:[%s2 + $0x8] sm:$0xff]
    %v67 = vld [vmem:[%s2 + $0x10] sm:$0xff]
    %v68 = vld [vmem:[%s2 + $0x18] sm:$0xff]
    %v69 = vld [vmem:[%s2 + $0x20] sm:$0xff]
    %v70 = vld [vmem:[%s2 + $0x28] sm:$0xff]
    %v71 = vld [vmem:[%s2 + $0x30] sm:$0xff]
    %v72 = vld [vmem:[%s2 + $0x38] sm:$0xff]
    %v73 = vld [vmem:[%s2 + $0x40] sm:$0xff]
    %v74 = vld [vmem:[%s2 + $0x48] sm:$0xff]
    %v75 = vld [vmem:[%s2 + $0x50] sm:$0xff]
    %v76 = vld [vmem:[%s2 + $0x58] sm:$0xff]
    %v77 = vld [vmem:[%s2 + $0x60] sm:$0xff]
    %v78 = vld [vmem:[%s2 + $0x68] sm:$0xff]
    %v79 = vld [vmem:[%s2 + $0x70] sm:$0xff]
    %v80 = vld [vmem:[%s2 + $0x78] sm:$0xff]
    %v81 = vld [vmem:[%s2 + $0x80] sm:$0xff]
    %v82 = vld [vmem:[%s2 + $0x88] sm:$0xff]
    %v83 = vld [vmem:[%s2 + $0x90] sm:$0xff]
    %v84 = vld [vmem:[%s2 + $0x98] sm:$0xff]
    %v85 = vld [vmem:[%s2 + $0xa0] sm:$0xff]
    %v86 = vld [vmem:[%s2 + $0xa8] sm:$0xff]
    %v87 = vld [vmem:[%s2 + $0xb0] sm:$0xff]
    %v88 = vld [vmem:[%s2 + $0xb8] sm:$0xff]
    %v89 = vld [vmem:[%s2 + $0xc0] sm:$0xff]
    %v90 = vld [vmem:[%s2 + $0xc8] sm:$0xff]
    %v91 = vld [vmem:[%s2 + $0xd0] sm:$0xff]
    %v92 = vld [vmem:[%s2 + $0xd8] sm:$0xff]
    %v93 = vld [vmem:[%s2 + $0xe0] sm:$0xff]
    %v94 = vld [vmem:[%s2 + $0xe8] sm:$0xff]
    %v95 = vld [vmem:[%s2 + $0xf0] sm:$0xff]
    %v96 = vld [vmem:[%s2 + $0xf8] sm:$0xff]
    %98 = vset.pattern.permute.xlu0 0
    %99 = vperm.xlu0 %98, %v65
    %v100 = vpop.permute.xlu0 %99
    %103 = vset.pattern.permute.xlu0 0
    %104 = vperm.xlu0 %103, %v66
    %v105 = vpop.permute.xlu0 %104
    %108 = vset.pattern.permute.xlu0 0
    %109 = vperm.xlu0 %108, %v67
    %v110 = vpop.permute.xlu0 %109
    %113 = vset.pattern.permute.xlu0 0
    %114 = vperm.xlu0 %113, %v68
    %v115 = vpop.permute.xlu0 %114
    %118 = vset.pattern.permute.xlu0 0
    %119 = vperm.xlu0 %118, %v69
    %v120 = vpop.permute.xlu0 %119
    %123 = vset.pattern.permute.xlu0 0
    %124 = vperm.xlu0 %123, %v70
    %v125 = vpop.permute.xlu0 %124
    %128 = vset.pattern.permute.xlu0 0
    %129 = vperm.xlu0 %128, %v71
    %v130 = vpop.permute.xlu0 %129
    %133 = vset.pattern.permute.xlu0 0
    %134 = vperm.xlu0 %133, %v72
    %v135 = vpop.permute.xlu0 %134
    %138 = vset.pattern.permute.xlu0 0
    %139 = vperm.xlu0 %138, %v73
    %v140 = vpop.permute.xlu0 %139
    %143 = vset.pattern.permute.xlu0 0
    %144 = vperm.xlu0 %143, %v74
    %v145 = vpop.permute.xlu0 %144
    %148 = vset.pattern.permute.xlu0 0
    %149 = vperm.xlu0 %148, %v75
    %v150 = vpop.permute.xlu0 %149
    %153 = vset.pattern.permute.xlu0 0
    %154 = vperm.xlu0 %153, %v76
    %v155 = vpop.permute.xlu0 %154
    %158 = vset.pattern.permute.xlu0 0
    %159 = vperm.xlu0 %158, %v77
    %v160 = vpop.permute.xlu0 %159
    %163 = vset.pattern.permute.xlu0 0
    %164 = vperm.xlu0 %163, %v78
    %v165 = vpop.permute.xlu0 %164
    %168 = vset.pattern.permute.xlu0 0
    %169 = vperm.xlu0 %168, %v79
    %v170 = vpop.permute.xlu0 %169
    %173 = vset.pattern.permute.xlu0 0
    %174 = vperm.xlu0 %173, %v80
    %v175 = vpop.permute.xlu0 %174
    %178 = vset.pattern.permute.xlu0 0
    %179 = vperm.xlu0 %178, %v81
    %v180 = vpop.permute.xlu0 %179
    %183 = vset.pattern.permute.xlu0 0
    %184 = vperm.xlu0 %183, %v82
    %v185 = vpop.permute.xlu0 %184
    %188 = vset.pattern.permute.xlu0 0
    %189 = vperm.xlu0 %188, %v83
    %v190 = vpop.permute.xlu0 %189
    %193 = vset.pattern.permute.xlu0 0
    %194 = vperm.xlu0 %193, %v84
    %v195 = vpop.permute.xlu0 %194
    %198 = vset.pattern.permute.xlu0 0
    %199 = vperm.xlu0 %198, %v85
    %v200 = vpop.permute.xlu0 %199
    %203 = vset.pattern.permute.xlu0 0
    %204 = vperm.xlu0 %203, %v86
    %v205 = vpop.permute.xlu0 %204
    %208 = vset.pattern.permute.xlu0 0
    %209 = vperm.xlu0 %208, %v87
    %v210 = vpop.permute.xlu0 %209
    %213 = vset.pattern.permute.xlu0 0
    %214 = vperm.xlu0 %213, %v88
    %v215 = vpop.permute.xlu0 %214
    %218 = vset.pattern.permute.xlu0 0
    %219 = vperm.xlu0 %218, %v89
    %v220 = vpop.permute.xlu0 %219
    %223 = vset.pattern.permute.xlu0 0
    %224 = vperm.xlu0 %223, %v90
    %v225 = vpop.permute.xlu0 %224
    %228 = vset.pattern.permute.xlu0 0
    %229 = vperm.xlu0 %228, %v91
    %v230 = vpop.permute.xlu0 %229
    %233 = vset.pattern.permute.xlu0 0
    %234 = vperm.xlu0 %233, %v92
    %v235 = vpop.permute.xlu0 %234
    %238 = vset.pattern.permute.xlu0 0
    %239 = vperm.xlu0 %238, %v93
    %v240 = vpop.permute.xlu0 %239
    %243 = vset.pattern.permute.xlu0 0
    %244 = vperm.xlu0 %243, %v94
    %v245 = vpop.permute.xlu0 %244
    %248 = vset.pattern.permute.xlu0 0
    %249 = vperm.xlu0 %248, %v95
    %v250 = vpop.permute.xlu0 %249
    %253 = vset.pattern.permute.xlu0 0
    %254 = vperm.xlu0 %253, %v96
    %v255 = vpop.permute.xlu0 %254
    %v289 = vunpack.c.l.b16 %v30
    %v290 = vunpack.c.l.b16 %v31
    %v291 = vunpack.c.l.b16 %v32
    %v292 = vunpack.c.l.b16 %v33
    %v293 = vunpack.c.l.b16 %v34
    %v294 = vunpack.c.l.b16 %v35
    %v295 = vunpack.c.l.b16 %v36
    %v296 = vunpack.c.l.b16 %v37
    %v297 = vunpack.c.l.b16 %v38
    %v298 = vunpack.c.l.b16 %v39
    %v299 = vunpack.c.l.b16 %v40
    %v300 = vunpack.c.l.b16 %v41
    %v301 = vunpack.c.l.b16 %v42
    %v302 = vunpack.c.l.b16 %v43
    %v303 = vunpack.c.l.b16 %v44
    %v304 = vunpack.c.l.b16 %v45
    %v305 = vunpack.c.l.b16 %v46
    %v306 = vunpack.c.l.b16 %v47
    %v307 = vunpack.c.l.b16 %v48
    %v308 = vunpack.c.l.b16 %v49
    %v309 = vunpack.c.l.b16 %v50
    %v310 = vunpack.c.l.b16 %v51
    %v311 = vunpack.c.l.b16 %v52
    %v312 = vunpack.c.l.b16 %v53
    %v313 = vunpack.c.l.b16 %v54
    %v314 = vunpack.c.l.b16 %v55
    %v315 = vunpack.c.l.b16 %v56
    %v316 = vunpack.c.l.b16 %v57
    %v317 = vunpack.c.l.b16 %v58
    %v318 = vunpack.c.l.b16 %v59
    %v319 = vunpack.c.l.b16 %v60
    %v320 = vunpack.c.l.b16 %v61
    %v321 = vpack.c.b16 %v290, %v289
    %v322 = vpack.c.b16 %v292, %v291
    %v323 = vpack.c.b16 %v294, %v293
    %v324 = vpack.c.b16 %v296, %v295
    %v325 = vpack.c.b16 %v298, %v297
    %v326 = vpack.c.b16 %v300, %v299
    %v327 = vpack.c.b16 %v302, %v301
    %v328 = vpack.c.b16 %v304, %v303
    %v329 = vpack.c.b16 %v306, %v305
    %v330 = vpack.c.b16 %v308, %v307
    %v331 = vpack.c.b16 %v310, %v309
    %v332 = vpack.c.b16 %v312, %v311
    %v333 = vpack.c.b16 %v314, %v313
    %v334 = vpack.c.b16 %v316, %v315
    %v335 = vpack.c.b16 %v318, %v317
    %v336 = vpack.c.b16 %v320, %v319
    %v340 = vunpack.c.l.b16 %v62
    %v341 = vunpack.c.l.b16 %v63
    %v342 = vunpack.c.l.b16 %v64
    %v343 = vpack.c.b16 %v341, %v340
    %v344 = vpack.c.b16 %v342, %v342
    %vm346 = vcmask 195584
    %v348 = vsel %vm346, %v321, 0
    %v351 = vsel %vm346, %v322, 0
    %v354 = vsel %vm346, %v323, 0
    %v357 = vsel %vm346, %v324, 0
    %v360 = vsel %vm346, %v325, 0
    %v363 = vsel %vm346, %v326, 0
    %v366 = vsel %vm346, %v327, 0
    %v369 = vsel %vm346, %v328, 0
    %v372 = vsel %vm346, %v329, 0
    %v375 = vsel %vm346, %v330, 0
    %v378 = vsel %vm346, %v331, 0
    %v381 = vsel %vm346, %v332, 0
    %v384 = vsel %vm346, %v333, 0
    %v387 = vsel %vm346, %v334, 0
    %v390 = vsel %vm346, %v335, 0
    %v393 = vsel %vm346, %v336, 0
    %vm395 = vcmask 1043456
    %v397 = vsel %vm395, %v344, 0
    %399 = vmatprep.subr.bf16.mxu0 0
    %400 = vmatpush1.bf16.msra.mxu0 0
    %401 = vmatprep.subr.bf16.mxu0 0
    %402 = vmatpush1.bf16.msra.mxu0 0
    %403 = vmatprep.subr.bf16.mxu0 0
    %404 = vmatpush1.bf16.msra.mxu0 0
    %405 = vmatprep.subr.bf16.mxu0 0
    %406 = vmatpush1.bf16.msra.mxu0 0
    %407 = vmatprep.subr.bf16.mxu0 0
    %408 = vmatpush1.bf16.msra.mxu0 0
    %409 = vmatprep.subr.bf16.mxu0 0
    %410 = vmatpush1.bf16.msra.mxu0 0
    %411 = vmatprep.subr.bf16.mxu0 0
    %412 = vmatpush1.bf16.msra.mxu0 %v397
    %413 = vmatprep.subr.bf16.mxu0 0
    %414 = vmatpush1.bf16.msra.mxu0 %v343
    %415 = vmatprep.subr.bf16.mxu0 0
    %416 = vmatpush2.bf16.msra.mxu0 0
    %417 = vmatprep.subr.bf16.mxu0 0
    %418 = vmatpush2.bf16.msra.mxu0 0
    %419 = vmatprep.subr.bf16.mxu0 0
    %420 = vmatpush2.bf16.msra.mxu0 0
    %421 = vmatprep.subr.bf16.mxu0 0
    %422 = vmatpush2.bf16.msra.mxu0 0
    %423 = vmatprep.subr.bf16.mxu0 0
    %424 = vmatpush2.bf16.msra.mxu0 0
    %425 = vmatprep.subr.bf16.mxu0 0
    %426 = vmatpush2.bf16.msra.mxu0 0
    %427 = vmatprep.subr.bf16.mxu0 0
    %428 = vmatpush2.bf16.msra.mxu0 0
    %429 = vmatprep.subr.bf16.mxu0 0
    %430 = vmatpush2.bf16.msra.mxu0 0
    %431 = vmatprep.mubr.bf16.mxu0 0
    %432 = vmatmul.mubr.bf16.gmra.mxu0 %v348
    %v433 = vpop.f32.mrf.mxu0
    %v434 = vadd.f32 %v100, %v433
    %v435 = vpop.f32.mrf.mxu0
    %v436 = vpop.f32.mrf.mxu0
    %v437 = vadd.f32 %v105, %v436
    %v438 = vpop.f32.mrf.mxu0
    %439 = vmatprep.mubr.bf16.mxu0 0
    %440 = vmatmul.mubr.bf16.gmra.mxu0 %v351
    %v441 = vpop.f32.mrf.mxu0
    %v442 = vadd.f32 %v110, %v441
    %v443 = vpop.f32.mrf.mxu0
    %v444 = vpop.f32.mrf.mxu0
    %v445 = vadd.f32 %v115, %v444
    %v446 = vpop.f32.mrf.mxu0
    %447 = vmatprep.mubr.bf16.mxu0 0
    %448 = vmatmul.mubr.bf16.gmra.mxu0 %v354
    %v449 = vpop.f32.mrf.mxu0
    %v450 = vadd.f32 %v120, %v449
    %v451 = vpop.f32.mrf.mxu0
    %v452 = vpop.f32.mrf.mxu0
    %v453 = vadd.f32 %v125, %v452
    %v454 = vpop.f32.mrf.mxu0
    %455 = vmatprep.mubr.bf16.mxu0 0
    %456 = vmatmul.mubr.bf16.gmra.mxu0 %v357
    %v457 = vpop.f32.mrf.mxu0
    %v458 = vadd.f32 %v130, %v457
    %v459 = vpop.f32.mrf.mxu0
    %v460 = vpop.f32.mrf.mxu0
    %v461 = vadd.f32 %v135, %v460
    %v462 = vpop.f32.mrf.mxu0
    %463 = vmatprep.mubr.bf16.mxu0 0
    %464 = vmatmul.mubr.bf16.gmra.mxu0 %v360
    %v465 = vpop.f32.mrf.mxu0
    %v466 = vadd.f32 %v140, %v465
    %v467 = vpop.f32.mrf.mxu0
    %v468 = vpop.f32.mrf.mxu0
    %v469 = vadd.f32 %v145, %v468
    %v470 = vpop.f32.mrf.mxu0
    %471 = vmatprep.mubr.bf16.mxu0 0
    %472 = vmatmul.mubr.bf16.gmra.mxu0 %v363
    %v473 = vpop.f32.mrf.mxu0
    %v474 = vadd.f32 %v150, %v473
    %v475 = vpop.f32.mrf.mxu0
    %v476 = vpop.f32.mrf.mxu0
    %v477 = vadd.f32 %v155, %v476
    %v478 = vpop.f32.mrf.mxu0
    %479 = vmatprep.mubr.bf16.mxu0 0
    %480 = vmatmul.mubr.bf16.gmra.mxu0 %v366
    %v481 = vpop.f32.mrf.mxu0
    %v482 = vadd.f32 %v160, %v481
    %v483 = vpop.f32.mrf.mxu0
    %v484 = vpop.f32.mrf.mxu0
    %v485 = vadd.f32 %v165, %v484
    %v486 = vpop.f32.mrf.mxu0
    %487 = vmatprep.mubr.bf16.mxu0 0
    %488 = vmatmul.mubr.bf16.gmra.mxu0 %v369
    %v489 = vpop.f32.mrf.mxu0
    %v490 = vadd.f32 %v170, %v489
    %v491 = vpop.f32.mrf.mxu0
    %v492 = vpop.f32.mrf.mxu0
    %v493 = vadd.f32 %v175, %v492
    %v494 = vpop.f32.mrf.mxu0
    %495 = vmatprep.mubr.bf16.mxu0 0
    %496 = vmatmul.mubr.bf16.gmra.mxu0 %v372
    %v497 = vpop.f32.mrf.mxu0
    %v498 = vadd.f32 %v180, %v497
    %v499 = vpop.f32.mrf.mxu0
    %v500 = vpop.f32.mrf.mxu0
    %v501 = vadd.f32 %v185, %v500
    %v502 = vpop.f32.mrf.mxu0
    %503 = vmatprep.mubr.bf16.mxu0 0
    %504 = vmatmul.mubr.bf16.gmra.mxu0 %v375
    %v505 = vpop.f32.mrf.mxu0
    %v506 = vadd.f32 %v190, %v505
    %v507 = vpop.f32.mrf.mxu0
    %v508 = vpop.f32.mrf.mxu0
    %v509 = vadd.f32 %v195, %v508
    %v510 = vpop.f32.mrf.mxu0
    %511 = vmatprep.mubr.bf16.mxu0 0
    %512 = vmatmul.mubr.bf16.gmra.mxu0 %v378
    %v513 = vpop.f32.mrf.mxu0
    %v514 = vadd.f32 %v200, %v513
    %v515 = vpop.f32.mrf.mxu0
    %v516 = vpop.f32.mrf.mxu0
    %v517 = vadd.f32 %v205, %v516
    %v518 = vpop.f32.mrf.mxu0
    %519 = vmatprep.mubr.bf16.mxu0 0
    %520 = vmatmul.mubr.bf16.gmra.mxu0 %v381
    %v521 = vpop.f32.mrf.mxu0
    %v522 = vadd.f32 %v210, %v521
    %v523 = vpop.f32.mrf.mxu0
    %v524 = vpop.f32.mrf.mxu0
    %v525 = vadd.f32 %v215, %v524
    %v526 = vpop.f32.mrf.mxu0
    %527 = vmatprep.mubr.bf16.mxu0 0
    %528 = vmatmul.mubr.bf16.gmra.mxu0 %v384
    %v529 = vpop.f32.mrf.mxu0
    %v530 = vadd.f32 %v220, %v529
    %v531 = vpop.f32.mrf.mxu0
    %v532 = vpop.f32.mrf.mxu0
    %v533 = vadd.f32 %v225, %v532
    %v534 = vpop.f32.mrf.mxu0
    %535 = vmatprep.mubr.bf16.mxu0 0
    %536 = vmatmul.mubr.bf16.gmra.mxu0 %v387
    %v537 = vpop.f32.mrf.mxu0
    %v538 = vadd.f32 %v230, %v537
    %v539 = vpop.f32.mrf.mxu0
    %v540 = vpop.f32.mrf.mxu0
    %v541 = vadd.f32 %v235, %v540
    %v542 = vpop.f32.mrf.mxu0
    %543 = vmatprep.mubr.bf16.mxu0 0
    %544 = vmatmul.mubr.bf16.gmra.mxu0 %v390
    %v545 = vpop.f32.mrf.mxu0
    %v546 = vadd.f32 %v240, %v545
    %v547 = vpop.f32.mrf.mxu0
    %v548 = vpop.f32.mrf.mxu0
    %v549 = vadd.f32 %v245, %v548
    %v550 = vpop.f32.mrf.mxu0
    %551 = vmatprep.mubr.bf16.mxu0 0
    %552 = vmatmul.mubr.bf16.gmra.mxu0 %v393
    %v553 = vpop.f32.mrf.mxu0
    %v554 = vadd.f32 %v250, %v553
    %v555 = vpop.f32.mrf.mxu0
    %v556 = vpop.f32.mrf.mxu0
    %v557 = vadd.f32 %v255, %v556
    %v558 = vpop.f32.mrf.mxu0
    %559 = vdwg.mxu0
    %v560 = vmax.f32 %v434, 0.0
    %v561 = vmax.f32 %v437, 0.0
    %v562 = vmax.f32 %v442, 0.0
    %v563 = vmax.f32 %v445, 0.0
    %v564 = vmax.f32 %v450, 0.0
    %v565 = vmax.f32 %v453, 0.0
    %v566 = vmax.f32 %v458, 0.0
    %v567 = vmax.f32 %v461, 0.0
    %v568 = vmax.f32 %v466, 0.0
    %v569 = vmax.f32 %v469, 0.0
    %v570 = vmax.f32 %v474, 0.0
    %v571 = vmax.f32 %v477, 0.0
    %v572 = vmax.f32 %v482, 0.0
    %v573 = vmax.f32 %v485, 0.0
    %v574 = vmax.f32 %v490, 0.0
    %v575 = vmax.f32 %v493, 0.0
    %v576 = vmax.f32 %v498, 0.0
    %v577 = vmax.f32 %v501, 0.0
    %v578 = vmax.f32 %v506, 0.0
    %v579 = vmax.f32 %v509, 0.0
    %v580 = vmax.f32 %v514, 0.0
    %v581 = vmax.f32 %v517, 0.0
    %v582 = vmax.f32 %v522, 0.0
    %v583 = vmax.f32 %v525, 0.0
    %v584 = vmax.f32 %v530, 0.0
    %v585 = vmax.f32 %v533, 0.0
    %v586 = vmax.f32 %v538, 0.0
    %v587 = vmax.f32 %v541, 0.0
    %v588 = vmax.f32 %v546, 0.0
    %v589 = vmax.f32 %v549, 0.0
    %v590 = vmax.f32 %v554, 0.0
    %v591 = vmax.f32 %v557, 0.0
    %v592 = vld [vmem:[%s3] sm:$0xff]
    %v593 = vld [vmem:[%s3 + $0x8] sm:$0xff]
    %v594 = vld [vmem:[%s3 + $0x10] sm:$0xff]
    %v595 = vld [vmem:[%s3 + $0x18] sm:$0xff]
    %v596 = vld [vmem:[%s3 + $0x20] sm:$0xff]
    %v597 = vld [vmem:[%s3 + $0x28] sm:$0xff]
    %v598 = vld [vmem:[%s3 + $0x30] sm:$0xff]
    %v599 = vld [vmem:[%s3 + $0x38] sm:$0xff]
    %v600 = vld [vmem:[%s3 + $0x40] sm:$0xff]
    %v601 = vld [vmem:[%s3 + $0x48] sm:$0xff]
    %v602 = vld [vmem:[%s3 + $0x50] sm:$0xff]
    %v603 = vld [vmem:[%s3 + $0x58] sm:$0xff]
    %v604 = vld [vmem:[%s3 + $0x60] sm:$0xff]
    %v605 = vld [vmem:[%s3 + $0x68] sm:$0xff]
    %v606 = vld [vmem:[%s3 + $0x70] sm:$0xff]
    %v607 = vld [vmem:[%s3 + $0x78] sm:$0xff]
    %v608 = vld [vmem:[%s3 + $0x80] sm:$0xff]
    %v609 = vld [vmem:[%s3 + $0x88] sm:$0xff]
    %v610 = vld [vmem:[%s3 + $0x90] sm:$0xff]
    %v611 = vld [vmem:[%s3 + $0x98] sm:$0xff]
    %v612 = vld [vmem:[%s3 + $0xa0] sm:$0xff]
    %v613 = vld [vmem:[%s3 + $0xa8] sm:$0xff]
    %v614 = vld [vmem:[%s3 + $0xb0] sm:$0xff]
    %v615 = vld [vmem:[%s3 + $0xb8] sm:$0xff]
    %v616 = vld [vmem:[%s3 + $0xc0] sm:$0xff]
    %v617 = vld [vmem:[%s3 + $0xc8] sm:$0xff]
    %v618 = vld [vmem:[%s3 + $0xd0] sm:$0xff]
    %v619 = vld [vmem:[%s3 + $0xd8] sm:$0xff]
    %v620 = vld [vmem:[%s3 + $0xe0] sm:$0xff]
    %v621 = vld [vmem:[%s3 + $0xe8] sm:$0xff]
    %v622 = vld [vmem:[%s3 + $0xf0] sm:$0xff]
    %v623 = vld [vmem:[%s3 + $0xf8] sm:$0xff]
    %v624 = vpack.c.bf16 %v561, %v560
    %v625 = vpack.c.bf16 %v563, %v562
    %v626 = vpack.c.bf16 %v565, %v564
    %v627 = vpack.c.bf16 %v567, %v566
    %v628 = vpack.c.bf16 %v569, %v568
    %v629 = vpack.c.bf16 %v571, %v570
    %v630 = vpack.c.bf16 %v573, %v572
    %v631 = vpack.c.bf16 %v575, %v574
    %v632 = vpack.c.bf16 %v577, %v576
    %v633 = vpack.c.bf16 %v579, %v578
    %v634 = vpack.c.bf16 %v581, %v580
    %v635 = vpack.c.bf16 %v583, %v582
    %v636 = vpack.c.bf16 %v585, %v584
    %v637 = vpack.c.bf16 %v587, %v586
    %v638 = vpack.c.bf16 %v589, %v588
    %v639 = vpack.c.bf16 %v591, %v590
    %v640 = vld [vmem:[%s4] sm:$0xff]
    %v641 = vld [vmem:[%s4 + $0x8] sm:$0xff]
    %v642 = vld [vmem:[%s4 + $0x10] sm:$0xff]
    %v643 = vld [vmem:[%s4 + $0x18] sm:$0xff]
    %v644 = vld [vmem:[%s4 + $0x20] sm:$0xff]
    %v645 = vld [vmem:[%s4 + $0x28] sm:$0xff]
    %v646 = vld [vmem:[%s4 + $0x30] sm:$0xff]
    %v647 = vld [vmem:[%s4 + $0x38] sm:$0xff]
    %v648 = vld [vmem:[%s4 + $0x40] sm:$0xff]
    %v649 = vld [vmem:[%s4 + $0x48] sm:$0xff]
    %v650 = vld [vmem:[%s4 + $0x50] sm:$0xff]
    %v651 = vld [vmem:[%s4 + $0x58] sm:$0xff]
    %v652 = vld [vmem:[%s4 + $0x60] sm:$0xff]
    %v653 = vld [vmem:[%s4 + $0x68] sm:$0xff]
    %v654 = vld [vmem:[%s4 + $0x70] sm:$0xff]
    %v655 = vld [vmem:[%s4 + $0x78] sm:$0xff]
    %v656 = vld [vmem:[%s4 + $0x80] sm:$0xff]
    %v657 = vld [vmem:[%s4 + $0x88] sm:$0xff]
    %v658 = vld [vmem:[%s4 + $0x90] sm:$0xff]
    %v659 = vld [vmem:[%s4 + $0x98] sm:$0xff]
    %v660 = vld [vmem:[%s4 + $0xa0] sm:$0xff]
    %v661 = vld [vmem:[%s4 + $0xa8] sm:$0xff]
    %v662 = vld [vmem:[%s4 + $0xb0] sm:$0xff]
    %v663 = vld [vmem:[%s4 + $0xb8] sm:$0xff]
    %v664 = vld [vmem:[%s4 + $0xc0] sm:$0xff]
    %v665 = vld [vmem:[%s4 + $0xc8] sm:$0xff]
    %v666 = vld [vmem:[%s4 + $0xd0] sm:$0xff]
    %v667 = vld [vmem:[%s4 + $0xd8] sm:$0xff]
    %v668 = vld [vmem:[%s4 + $0xe0] sm:$0xff]
    %v669 = vld [vmem:[%s4 + $0xe8] sm:$0xff]
    %v670 = vld [vmem:[%s4 + $0xf0] sm:$0xff]
    %v671 = vld [vmem:[%s4 + $0xf8] sm:$0xff]
    %673 = vset.pattern.permute.xlu0 0
    %674 = vperm.xlu0 %673, %v640
    %v675 = vpop.permute.xlu0 %674
    %678 = vset.pattern.permute.xlu0 0
    %679 = vperm.xlu0 %678, %v641
    %v680 = vpop.permute.xlu0 %679
    %683 = vset.pattern.permute.xlu0 0
    %684 = vperm.xlu0 %683, %v642
    %v685 = vpop.permute.xlu0 %684
    %688 = vset.pattern.permute.xlu0 0
    %689 = vperm.xlu0 %688, %v643
    %v690 = vpop.permute.xlu0 %689
    %693 = vset.pattern.permute.xlu0 0
    %694 = vperm.xlu0 %693, %v644
    %v695 = vpop.permute.xlu0 %694
    %698 = vset.pattern.permute.xlu0 0
    %699 = vperm.xlu0 %698, %v645
    %v700 = vpop.permute.xlu0 %699
    %703 = vset.pattern.permute.xlu0 0
    %704 = vperm.xlu0 %703, %v646
    %v705 = vpop.permute.xlu0 %704
    %708 = vset.pattern.permute.xlu0 0
    %709 = vperm.xlu0 %708, %v647
    %v710 = vpop.permute.xlu0 %709
    %713 = vset.pattern.permute.xlu0 0
    %714 = vperm.xlu0 %713, %v648
    %v715 = vpop.permute.xlu0 %714
    %718 = vset.pattern.permute.xlu0 0
    %719 = vperm.xlu0 %718, %v649
    %v720 = vpop.permute.xlu0 %719
    %723 = vset.pattern.permute.xlu0 0
    %724 = vperm.xlu0 %723, %v650
    %v725 = vpop.permute.xlu0 %724
    %728 = vset.pattern.permute.xlu0 0
    %729 = vperm.xlu0 %728, %v651
    %v730 = vpop.permute.xlu0 %729
    %733 = vset.pattern.permute.xlu0 0
    %734 = vperm.xlu0 %733, %v652
    %v735 = vpop.permute.xlu0 %734
    %738 = vset.pattern.permute.xlu0 0
    %739 = vperm.xlu0 %738, %v653
    %v740 = vpop.permute.xlu0 %739
    %743 = vset.pattern.permute.xlu0 0
    %744 = vperm.xlu0 %743, %v654
    %v745 = vpop.permute.xlu0 %744
    %748 = vset.pattern.permute.xlu0 0
    %749 = vperm.xlu0 %748, %v655
    %v750 = vpop.permute.xlu0 %749
    %753 = vset.pattern.permute.xlu0 0
    %754 = vperm.xlu0 %753, %v656
    %v755 = vpop.permute.xlu0 %754
    %758 = vset.pattern.permute.xlu0 0
    %759 = vperm.xlu0 %758, %v657
    %v760 = vpop.permute.xlu0 %759
    %763 = vset.pattern.permute.xlu0 0
    %764 = vperm.xlu0 %763, %v658
    %v765 = vpop.permute.xlu0 %764
    %768 = vset.pattern.permute.xlu0 0
    %769 = vperm.xlu0 %768, %v659
    %v770 = vpop.permute.xlu0 %769
    %773 = vset.pattern.permute.xlu0 0
    %774 = vperm.xlu0 %773, %v660
    %v775 = vpop.permute.xlu0 %774
    %778 = vset.pattern.permute.xlu0 0
    %779 = vperm.xlu0 %778, %v661
    %v780 = vpop.permute.xlu0 %779
    %783 = vset.pattern.permute.xlu0 0
    %784 = vperm.xlu0 %783, %v662
    %v785 = vpop.permute.xlu0 %784
    %788 = vset.pattern.permute.xlu0 0
    %789 = vperm.xlu0 %788, %v663
    %v790 = vpop.permute.xlu0 %789
    %793 = vset.pattern.permute.xlu0 0
    %794 = vperm.xlu0 %793, %v664
    %v795 = vpop.permute.xlu0 %794
    %798 = vset.pattern.permute.xlu0 0
    %799 = vperm.xlu0 %798, %v665
    %v800 = vpop.permute.xlu0 %799
    %803 = vset.pattern.permute.xlu0 0
    %804 = vperm.xlu0 %803, %v666
    %v805 = vpop.permute.xlu0 %804
    %808 = vset.pattern.permute.xlu0 0
    %809 = vperm.xlu0 %808, %v667
    %v810 = vpop.permute.xlu0 %809
    %813 = vset.pattern.permute.xlu0 0
    %814 = vperm.xlu0 %813, %v668
    %v815 = vpop.permute.xlu0 %814
    %818 = vset.pattern.permute.xlu0 0
    %819 = vperm.xlu0 %818, %v669
    %v820 = vpop.permute.xlu0 %819
    %823 = vset.pattern.permute.xlu0 0
    %824 = vperm.xlu0 %823, %v670
    %v825 = vpop.permute.xlu0 %824
    %828 = vset.pattern.permute.xlu0 0
    %829 = vperm.xlu0 %828, %v671
    %v830 = vpop.permute.xlu0 %829
    %v864 = vunpack.c.l.b16 %v592
    %v865 = vunpack.c.h.b16 %v592
    %v866 = vunpack.c.l.b16 %v593
    %v867 = vunpack.c.h.b16 %v593
    %v868 = vunpack.c.l.b16 %v594
    %v869 = vunpack.c.h.b16 %v594
    %v870 = vunpack.c.l.b16 %v595
    %v871 = vunpack.c.h.b16 %v595
    %v872 = vunpack.c.l.b16 %v596
    %v873 = vunpack.c.h.b16 %v596
    %v874 = vunpack.c.l.b16 %v597
    %v875 = vunpack.c.h.b16 %v597
    %v876 = vunpack.c.l.b16 %v598
    %v877 = vunpack.c.h.b16 %v598
    %v878 = vunpack.c.l.b16 %v599
    %v879 = vunpack.c.h.b16 %v599
    %v880 = vunpack.c.l.b16 %v600
    %v881 = vunpack.c.h.b16 %v600
    %v882 = vunpack.c.l.b16 %v601
    %v883 = vunpack.c.h.b16 %v601
    %v884 = vunpack.c.l.b16 %v602
    %v885 = vunpack.c.h.b16 %v602
    %v886 = vunpack.c.l.b16 %v603
    %v887 = vunpack.c.h.b16 %v603
    %v888 = vunpack.c.l.b16 %v604
    %v889 = vunpack.c.h.b16 %v604
    %v890 = vunpack.c.l.b16 %v605
    %v891 = vunpack.c.h.b16 %v605
    %v892 = vunpack.c.l.b16 %v606
    %v893 = vunpack.c.h.b16 %v606
    %v894 = vunpack.c.l.b16 %v607
    %v895 = vunpack.c.h.b16 %v607
    %v896 = vunpack.c.l.b16 %v608
    %v897 = vunpack.c.h.b16 %v608
    %v898 = vunpack.c.l.b16 %v609
    %v899 = vunpack.c.h.b16 %v609
    %v900 = vunpack.c.l.b16 %v610
    %v901 = vunpack.c.h.b16 %v610
    %v902 = vunpack.c.l.b16 %v611
    %v903 = vunpack.c.h.b16 %v611
    %v904 = vunpack.c.l.b16 %v612
    %v905 = vunpack.c.h.b16 %v612
    %v906 = vunpack.c.l.b16 %v613
    %v907 = vunpack.c.h.b16 %v613
    %v908 = vunpack.c.l.b16 %v614
    %v909 = vunpack.c.h.b16 %v614
    %v910 = vunpack.c.l.b16 %v615
    %v911 = vunpack.c.h.b16 %v615
    %v912 = vunpack.c.l.b16 %v616
    %v913 = vunpack.c.h.b16 %v616
    %v914 = vunpack.c.l.b16 %v617
    %v915 = vunpack.c.h.b16 %v617
    %v916 = vunpack.c.l.b16 %v618
    %v917 = vunpack.c.h.b16 %v618
    %v918 = vunpack.c.l.b16 %v619
    %v919 = vunpack.c.h.b16 %v619
    %v920 = vunpack.c.l.b16 %v620
    %v921 = vunpack.c.h.b16 %v620
    %v922 = vunpack.c.l.b16 %v621
    %v923 = vunpack.c.h.b16 %v621
    %v924 = vunpack.c.l.b16 %v622
    %v925 = vunpack.c.h.b16 %v622
    %v926 = vunpack.c.l.b16 %v623
    %v927 = vunpack.c.h.b16 %v623
    %v928 = vpack.c.b16 %v866, %v864
    %v929 = vpack.c.b16 %v867, %v865
    %v930 = vpack.c.b16 %v870, %v868
    %v931 = vpack.c.b16 %v871, %v869
    %v932 = vpack.c.b16 %v874, %v872
    %v933 = vpack.c.b16 %v875, %v873
    %v934 = vpack.c.b16 %v878, %v876
    %v935 = vpack.c.b16 %v879, %v877
    %v936 = vpack.c.b16 %v882, %v880
    %v937 = vpack.c.b16 %v883, %v881
    %v938 = vpack.c.b16 %v886, %v884
    %v939 = vpack.c.b16 %v887, %v885
    %v940 = vpack.c.b16 %v890, %v888
    %v941 = vpack.c.b16 %v891, %v889
    %v942 = vpack.c.b16 %v894, %v892
    %v943 = vpack.c.b16 %v895, %v893
    %v944 = vpack.c.b16 %v898, %v896
    %v945 = vpack.c.b16 %v899, %v897
    %v946 = vpack.c.b16 %v902, %v900
    %v947 = vpack.c.b16 %v903, %v901
    %v948 = vpack.c.b16 %v906, %v904
    %v949 = vpack.c.b16 %v907, %v905
    %v950 = vpack.c.b16 %v910, %v908
    %v951 = vpack.c.b16 %v911, %v909
    %v952 = vpack.c.b16 %v914, %v912
    %v953 = vpack.c.b16 %v915, %v913
    %v954 = vpack.c.b16 %v918, %v916
    %v955 = vpack.c.b16 %v919, %v917
    %v956 = vpack.c.b16 %v922, %v920
    %v957 = vpack.c.b16 %v923, %v921
    %v958 = vpack.c.b16 %v926, %v924
    %v959 = vpack.c.b16 %v927, %v925
    %992 = vmatprep.subr.bf16.mxu0 0
    %993 = vmatpush1.bf16.msra.mxu0 %v631
    %994 = vmatprep.subr.bf16.mxu0 0
    %995 = vmatpush1.bf16.msra.mxu0 %v630
    %996 = vmatprep.subr.bf16.mxu0 0
    %997 = vmatpush1.bf16.msra.mxu0 %v629
    %998 = vmatprep.subr.bf16.mxu0 0
    %999 = vmatpush1.bf16.msra.mxu0 %v628
    %1000 = vmatprep.subr.bf16.mxu0 0
    %1001 = vmatpush1.bf16.msra.mxu0 %v627
    %1002 = vmatprep.subr.bf16.mxu0 0
    %1003 = vmatpush1.bf16.msra.mxu0 %v626
    %1004 = vmatprep.subr.bf16.mxu0 0
    %1005 = vmatpush1.bf16.msra.mxu0 %v625
    %1006 = vmatprep.subr.bf16.mxu0 0
    %1007 = vmatpush1.bf16.msra.mxu0 %v624
    %1008 = vmatprep.subr.bf16.mxu0 0
    %1009 = vmatpush2.bf16.msra.mxu0 %v639
    %1010 = vmatprep.subr.bf16.mxu0 0
    %1011 = vmatpush2.bf16.msra.mxu0 %v638
    %1012 = vmatprep.subr.bf16.mxu0 0
    %1013 = vmatpush2.bf16.msra.mxu0 %v637
    %1014 = vmatprep.subr.bf16.mxu0 0
    %1015 = vmatpush2.bf16.msra.mxu0 %v636
    %1016 = vmatprep.subr.bf16.mxu0 0
    %1017 = vmatpush2.bf16.msra.mxu0 %v635
    %1018 = vmatprep.subr.bf16.mxu0 0
    %1019 = vmatpush2.bf16.msra.mxu0 %v634
    %1020 = vmatprep.subr.bf16.mxu0 0
    %1021 = vmatpush2.bf16.msra.mxu0 %v633
    %1022 = vmatprep.subr.bf16.mxu0 0
    %1023 = vmatpush2.bf16.msra.mxu0 %v632
    %1024 = vmatprep.mubr.bf16.mxu0 %v929
    %1025 = vmatmul.mubr.bf16.gmra.mxu0 %v928
    %v1026 = vpop.f32.mrf.mxu0
    %v1027 = vadd.f32 %v675, %v1026
    %v1028 = vpop.f32.mrf.mxu0
    %v1029 = vpop.f32.mrf.mxu0
    %v1030 = vadd.f32 %v680, %v1029
    %v1031 = vpop.f32.mrf.mxu0
    %1032 = vmatprep.mubr.bf16.mxu0 %v931
    %1033 = vmatmul.mubr.bf16.gmra.mxu0 %v930
    %v1034 = vpop.f32.mrf.mxu0
    %v1035 = vadd.f32 %v685, %v1034
    %v1036 = vpop.f32.mrf.mxu0
    %v1037 = vpop.f32.mrf.mxu0
    %v1038 = vadd.f32 %v690, %v1037
    %v1039 = vpop.f32.mrf.mxu0
    %1040 = vmatprep.mubr.bf16.mxu0 %v933
    %1041 = vmatmul.mubr.bf16.gmra.mxu0 %v932
    %v1042 = vpop.f32.mrf.mxu0
    %v1043 = vadd.f32 %v695, %v1042
    %v1044 = vpop.f32.mrf.mxu0
    %v1045 = vpop.f32.mrf.mxu0
    %v1046 = vadd.f32 %v700, %v1045
    %v1047 = vpop.f32.mrf.mxu0
    %1048 = vmatprep.mubr.bf16.mxu0 %v935
    %1049 = vmatmul.mubr.bf16.gmra.mxu0 %v934
    %v1050 = vpop.f32.mrf.mxu0
    %v1051 = vadd.f32 %v705, %v1050
    %v1052 = vpop.f32.mrf.mxu0
    %v1053 = vpop.f32.mrf.mxu0
    %v1054 = vadd.f32 %v710, %v1053
    %v1055 = vpop.f32.mrf.mxu0
    %1056 = vmatprep.mubr.bf16.mxu0 %v937
    %1057 = vmatmul.mubr.bf16.gmra.mxu0 %v936
    %v1058 = vpop.f32.mrf.mxu0
    %v1059 = vadd.f32 %v715, %v1058
    %v1060 = vpop.f32.mrf.mxu0
    %v1061 = vpop.f32.mrf.mxu0
    %v1062 = vadd.f32 %v720, %v1061
    %v1063 = vpop.f32.mrf.mxu0
    %1064 = vmatprep.mubr.bf16.mxu0 %v939
    %1065 = vmatmul.mubr.bf16.gmra.mxu0 %v938
    %v1066 = vpop.f32.mrf.mxu0
    %v1067 = vadd.f32 %v725, %v1066
    %v1068 = vpop.f32.mrf.mxu0
    %v1069 = vpop.f32.mrf.mxu0
    %v1070 = vadd.f32 %v730, %v1069
    %v1071 = vpop.f32.mrf.mxu0
    %1072 = vmatprep.mubr.bf16.mxu0 %v941
    %1073 = vmatmul.mubr.bf16.gmra.mxu0 %v940
    %v1074 = vpop.f32.mrf.mxu0
    %v1075 = vadd.f32 %v735, %v1074
    %v1076 = vpop.f32.mrf.mxu0
    %v1077 = vpop.f32.mrf.mxu0
    %v1078 = vadd.f32 %v740, %v1077
    %v1079 = vpop.f32.mrf.mxu0
    %1080 = vmatprep.mubr.bf16.mxu0 %v943
    %1081 = vmatmul.mubr.bf16.gmra.mxu0 %v942
    %v1082 = vpop.f32.mrf.mxu0
    %v1083 = vadd.f32 %v745, %v1082
    %v1084 = vpop.f32.mrf.mxu0
    %v1085 = vpop.f32.mrf.mxu0
    %v1086 = vadd.f32 %v750, %v1085
    %v1087 = vpop.f32.mrf.mxu0
    %1088 = vmatprep.mubr.bf16.mxu0 %v945
    %1089 = vmatmul.mubr.bf16.gmra.mxu0 %v944
    %v1090 = vpop.f32.mrf.mxu0
    %v1091 = vadd.f32 %v755, %v1090
    %v1092 = vpop.f32.mrf.mxu0
    %v1093 = vpop.f32.mrf.mxu0
    %v1094 = vadd.f32 %v760, %v1093
    %v1095 = vpop.f32.mrf.mxu0
    %1096 = vmatprep.mubr.bf16.mxu0 %v947
    %1097 = vmatmul.mubr.bf16.gmra.mxu0 %v946
    %v1098 = vpop.f32.mrf.mxu0
    %v1099 = vadd.f32 %v765, %v1098
    %v1100 = vpop.f32.mrf.mxu0
    %v1101 = vpop.f32.mrf.mxu0
    %v1102 = vadd.f32 %v770, %v1101
    %v1103 = vpop.f32.mrf.mxu0
    %1104 = vmatprep.mubr.bf16.mxu0 %v949
    %1105 = vmatmul.mubr.bf16.gmra.mxu0 %v948
    %v1106 = vpop.f32.mrf.mxu0
    %v1107 = vadd.f32 %v775, %v1106
    %v1108 = vpop.f32.mrf.mxu0
    %v1109 = vpop.f32.mrf.mxu0
    %v1110 = vadd.f32 %v780, %v1109
    %v1111 = vpop.f32.mrf.mxu0
    %1112 = vmatprep.mubr.bf16.mxu0 %v951
    %1113 = vmatmul.mubr.bf16.gmra.mxu0 %v950
    %v1114 = vpop.f32.mrf.mxu0
    %v1115 = vadd.f32 %v785, %v1114
    %v1116 = vpop.f32.mrf.mxu0
    %v1117 = vpop.f32.mrf.mxu0
    %v1118 = vadd.f32 %v790, %v1117
    %v1119 = vpop.f32.mrf.mxu0
    %1120 = vmatprep.mubr.bf16.mxu0 %v953
    %1121 = vmatmul.mubr.bf16.gmra.mxu0 %v952
    %v1122 = vpop.f32.mrf.mxu0
    %v1123 = vadd.f32 %v795, %v1122
    %v1124 = vpop.f32.mrf.mxu0
    %v1125 = vpop.f32.mrf.mxu0
    %v1126 = vadd.f32 %v800, %v1125
    %v1127 = vpop.f32.mrf.mxu0
    %1128 = vmatprep.mubr.bf16.mxu0 %v955
    %1129 = vmatmul.mubr.bf16.gmra.mxu0 %v954
    %v1130 = vpop.f32.mrf.mxu0
    %v1131 = vadd.f32 %v805, %v1130
    %v1132 = vpop.f32.mrf.mxu0
    %v1133 = vpop.f32.mrf.mxu0
    %v1134 = vadd.f32 %v810, %v1133
    %v1135 = vpop.f32.mrf.mxu0
    %1136 = vmatprep.mubr.bf16.mxu0 %v957
    %1137 = vmatmul.mubr.bf16.gmra.mxu0 %v956
    %v1138 = vpop.f32.mrf.mxu0
    %v1139 = vadd.f32 %v815, %v1138
    %v1140 = vpop.f32.mrf.mxu0
    %v1141 = vpop.f32.mrf.mxu0
    %v1142 = vadd.f32 %v820, %v1141
    %v1143 = vpop.f32.mrf.mxu0
    %1144 = vmatprep.mubr.bf16.mxu0 %v959
    %1145 = vmatmul.mubr.bf16.gmra.mxu0 %v958
    %v1146 = vpop.f32.mrf.mxu0
    %v1147 = vadd.f32 %v825, %v1146
    %v1148 = vpop.f32.mrf.mxu0
    %v1149 = vpop.f32.mrf.mxu0
    %v1150 = vadd.f32 %v830, %v1149
    %v1151 = vpop.f32.mrf.mxu0
    %1152 = vdwg.mxu0
    %v1153 = vmax.f32 %v1027, 0.0
    %v1154 = vmax.f32 %v1030, 0.0
    %v1155 = vmax.f32 %v1035, 0.0
    %v1156 = vmax.f32 %v1038, 0.0
    %v1157 = vmax.f32 %v1043, 0.0
    %v1158 = vmax.f32 %v1046, 0.0
    %v1159 = vmax.f32 %v1051, 0.0
    %v1160 = vmax.f32 %v1054, 0.0
    %v1161 = vmax.f32 %v1059, 0.0
    %v1162 = vmax.f32 %v1062, 0.0
    %v1163 = vmax.f32 %v1067, 0.0
    %v1164 = vmax.f32 %v1070, 0.0
    %v1165 = vmax.f32 %v1075, 0.0
    %v1166 = vmax.f32 %v1078, 0.0
    %v1167 = vmax.f32 %v1083, 0.0
    %v1168 = vmax.f32 %v1086, 0.0
    %v1169 = vmax.f32 %v1091, 0.0
    %v1170 = vmax.f32 %v1094, 0.0
    %v1171 = vmax.f32 %v1099, 0.0
    %v1172 = vmax.f32 %v1102, 0.0
    %v1173 = vmax.f32 %v1107, 0.0
    %v1174 = vmax.f32 %v1110, 0.0
    %v1175 = vmax.f32 %v1115, 0.0
    %v1176 = vmax.f32 %v1118, 0.0
    %v1177 = vmax.f32 %v1123, 0.0
    %v1178 = vmax.f32 %v1126, 0.0
    %v1179 = vmax.f32 %v1131, 0.0
    %v1180 = vmax.f32 %v1134, 0.0
    %v1181 = vmax.f32 %v1139, 0.0
    %v1182 = vmax.f32 %v1142, 0.0
    %v1183 = vmax.f32 %v1147, 0.0
    %v1184 = vmax.f32 %v1150, 0.0
    %v1185 = vld [vmem:[%s5] sm:$0xff]
    %v1186 = vld [vmem:[%s5 + $0x8] sm:$0xff]
    %v1187 = vld [vmem:[%s5 + $0x10] sm:$0xff]
    %v1188 = vld [vmem:[%s5 + $0x18] sm:$0xff]
    %v1189 = vld [vmem:[%s5 + $0x20] sm:$0xff]
    %v1190 = vld [vmem:[%s5 + $0x28] sm:$0xff]
    %v1191 = vld [vmem:[%s5 + $0x30] sm:$0xff]
    %v1192 = vld [vmem:[%s5 + $0x38] sm:$0xff]
    %v1193 = vld [vmem:[%s5 + $0x40] sm:$0xff]
    %v1194 = vld [vmem:[%s5 + $0x48] sm:$0xff]
    %v1195 = vld [vmem:[%s5 + $0x50] sm:$0xff]
    %v1196 = vld [vmem:[%s5 + $0x58] sm:$0xff]
    %v1197 = vld [vmem:[%s5 + $0x60] sm:$0xff]
    %v1198 = vld [vmem:[%s5 + $0x68] sm:$0xff]
    %v1199 = vld [vmem:[%s5 + $0x70] sm:$0xff]
    %v1200 = vld [vmem:[%s5 + $0x78] sm:$0xff]
    %v1201 = vld [vmem:[%s5 + $0x80] sm:$0xff]
    %v1202 = vld [vmem:[%s5 + $0x88] sm:$0xff]
    %v1203 = vld [vmem:[%s5 + $0x90] sm:$0xff]
    %v1204 = vld [vmem:[%s5 + $0x98] sm:$0xff]
    %v1205 = vld [vmem:[%s5 + $0xa0] sm:$0xff]
    %v1206 = vld [vmem:[%s5 + $0xa8] sm:$0xff]
    %v1207 = vld [vmem:[%s5 + $0xb0] sm:$0xff]
    %v1208 = vld [vmem:[%s5 + $0xb8] sm:$0xff]
    %v1209 = vld [vmem:[%s5 + $0xc0] sm:$0xff]
    %v1210 = vld [vmem:[%s5 + $0xc8] sm:$0xff]
    %v1211 = vld [vmem:[%s5 + $0xd0] sm:$0xff]
    %v1212 = vld [vmem:[%s5 + $0xd8] sm:$0xff]
    %v1213 = vld [vmem:[%s5 + $0xe0] sm:$0xff]
    %v1214 = vld [vmem:[%s5 + $0xe8] sm:$0xff]
    %v1215 = vld [vmem:[%s5 + $0xf0] sm:$0xff]
    %v1216 = vld [vmem:[%s5 + $0xf8] sm:$0xff]
    %1218 = vset.pattern.permute.xlu0 0
    %1219 = vperm.xlu0 %1218, %v1185
    %v1220 = vpop.permute.xlu0 %1219
    %1223 = vset.pattern.permute.xlu0 0
    %1224 = vperm.xlu0 %1223, %v1186
    %v1225 = vpop.permute.xlu0 %1224
    %1228 = vset.pattern.permute.xlu0 0
    %1229 = vperm.xlu0 %1228, %v1187
    %v1230 = vpop.permute.xlu0 %1229
    %1233 = vset.pattern.permute.xlu0 0
    %1234 = vperm.xlu0 %1233, %v1188
    %v1235 = vpop.permute.xlu0 %1234
    %1238 = vset.pattern.permute.xlu0 0
    %1239 = vperm.xlu0 %1238, %v1189
    %v1240 = vpop.permute.xlu0 %1239
    %1243 = vset.pattern.permute.xlu0 0
    %1244 = vperm.xlu0 %1243, %v1190
    %v1245 = vpop.permute.xlu0 %1244
    %1248 = vset.pattern.permute.xlu0 0
    %1249 = vperm.xlu0 %1248, %v1191
    %v1250 = vpop.permute.xlu0 %1249
    %1253 = vset.pattern.permute.xlu0 0
    %1254 = vperm.xlu0 %1253, %v1192
    %v1255 = vpop.permute.xlu0 %1254
    %1258 = vset.pattern.permute.xlu0 0
    %1259 = vperm.xlu0 %1258, %v1193
    %v1260 = vpop.permute.xlu0 %1259
    %1263 = vset.pattern.permute.xlu0 0
    %1264 = vperm.xlu0 %1263, %v1194
    %v1265 = vpop.permute.xlu0 %1264
    %1268 = vset.pattern.permute.xlu0 0
    %1269 = vperm.xlu0 %1268, %v1195
    %v1270 = vpop.permute.xlu0 %1269
    %1273 = vset.pattern.permute.xlu0 0
    %1274 = vperm.xlu0 %1273, %v1196
    %v1275 = vpop.permute.xlu0 %1274
    %1278 = vset.pattern.permute.xlu0 0
    %1279 = vperm.xlu0 %1278, %v1197
    %v1280 = vpop.permute.xlu0 %1279
    %1283 = vset.pattern.permute.xlu0 0
    %1284 = vperm.xlu0 %1283, %v1198
    %v1285 = vpop.permute.xlu0 %1284
    %1288 = vset.pattern.permute.xlu0 0
    %1289 = vperm.xlu0 %1288, %v1199
    %v1290 = vpop.permute.xlu0 %1289
    %1293 = vset.pattern.permute.xlu0 0
    %1294 = vperm.xlu0 %1293, %v1200
    %v1295 = vpop.permute.xlu0 %1294
    %1298 = vset.pattern.permute.xlu0 0
    %1299 = vperm.xlu0 %1298, %v1201
    %v1300 = vpop.permute.xlu0 %1299
    %1303 = vset.pattern.permute.xlu0 0
    %1304 = vperm.xlu0 %1303, %v1202
    %v1305 = vpop.permute.xlu0 %1304
    %1308 = vset.pattern.permute.xlu0 0
    %1309 = vperm.xlu0 %1308, %v1203
    %v1310 = vpop.permute.xlu0 %1309
    %1313 = vset.pattern.permute.xlu0 0
    %1314 = vperm.xlu0 %1313, %v1204
    %v1315 = vpop.permute.xlu0 %1314
    %1318 = vset.pattern.permute.xlu0 0
    %1319 = vperm.xlu0 %1318, %v1205
    %v1320 = vpop.permute.xlu0 %1319
    %1323 = vset.pattern.permute.xlu0 0
    %1324 = vperm.xlu0 %1323, %v1206
    %v1325 = vpop.permute.xlu0 %1324
    %1328 = vset.pattern.permute.xlu0 0
    %1329 = vperm.xlu0 %1328, %v1207
    %v1330 = vpop.permute.xlu0 %1329
    %1333 = vset.pattern.permute.xlu0 0
    %1334 = vperm.xlu0 %1333, %v1208
    %v1335 = vpop.permute.xlu0 %1334
    %1338 = vset.pattern.permute.xlu0 0
    %1339 = vperm.xlu0 %1338, %v1209
    %v1340 = vpop.permute.xlu0 %1339
    %1343 = vset.pattern.permute.xlu0 0
    %1344 = vperm.xlu0 %1343, %v1210
    %v1345 = vpop.permute.xlu0 %1344
    %1348 = vset.pattern.permute.xlu0 0
    %1349 = vperm.xlu0 %1348, %v1211
    %v1350 = vpop.permute.xlu0 %1349
    %1353 = vset.pattern.permute.xlu0 0
    %1354 = vperm.xlu0 %1353, %v1212
    %v1355 = vpop.permute.xlu0 %1354
    %1358 = vset.pattern.permute.xlu0 0
    %1359 = vperm.xlu0 %1358, %v1213
    %v1360 = vpop.permute.xlu0 %1359
    %1363 = vset.pattern.permute.xlu0 0
    %1364 = vperm.xlu0 %1363, %v1214
    %v1365 = vpop.permute.xlu0 %1364
    %1368 = vset.pattern.permute.xlu0 0
    %1369 = vperm.xlu0 %1368, %v1215
    %v1370 = vpop.permute.xlu0 %1369
    %1373 = vset.pattern.permute.xlu0 0
    %1374 = vperm.xlu0 %1373, %v1216
    %v1375 = vpop.permute.xlu0 %1374
    %v1377 = vmul.f32 %v1153, %v1220
    %v1378 = vmul.f32 %v1154, %v1225
    %v1379 = vmul.f32 %v1155, %v1230
    %v1380 = vmul.f32 %v1156, %v1235
    %v1381 = vmul.f32 %v1157, %v1240
    %v1382 = vmul.f32 %v1158, %v1245
    %v1383 = vmul.f32 %v1159, %v1250
    %v1384 = vmul.f32 %v1160, %v1255
    %v1385 = vmul.f32 %v1161, %v1260
    %v1386 = vmul.f32 %v1162, %v1265
    %v1387 = vmul.f32 %v1163, %v1270
    %v1388 = vmul.f32 %v1164, %v1275
    %v1389 = vmul.f32 %v1165, %v1280
    %v1390 = vmul.f32 %v1166, %v1285
    %v1391 = vmul.f32 %v1167, %v1290
    %v1392 = vmul.f32 %v1168, %v1295
    %v1393 = vmul.f32 %v1169, %v1300
    %v1394 = vmul.f32 %v1170, %v1305
    %v1395 = vmul.f32 %v1171, %v1310
    %v1396 = vmul.f32 %v1172, %v1315
    %v1397 = vmul.f32 %v1173, %v1320
    %v1398 = vmul.f32 %v1174, %v1325
    %v1399 = vmul.f32 %v1175, %v1330
    %v1400 = vmul.f32 %v1176, %v1335
    %v1401 = vmul.f32 %v1177, %v1340
    %v1402 = vmul.f32 %v1178, %v1345
    %v1403 = vmul.f32 %v1179, %v1350
    %v1404 = vmul.f32 %v1180, %v1355
    %v1405 = vmul.f32 %v1181, %v1360
    %v1406 = vmul.f32 %v1182, %v1365
    %v1407 = vmul.f32 %v1183, %v1370
    %v1408 = vmul.f32 %v1184, %v1375
    %v1409 = vadd.f32 %v1377, %v1378
    %v1410 = vadd.f32 %v1409, %v1379
    %v1411 = vadd.f32 %v1410, %v1380
    %v1412 = vadd.f32 %v1411, %v1381
    %v1413 = vadd.f32 %v1412, %v1382
    %v1414 = vadd.f32 %v1413, %v1383
    %v1415 = vadd.f32 %v1414, %v1384
    %v1416 = vadd.f32 %v1415, %v1385
    %v1417 = vadd.f32 %v1416, %v1386
    %v1418 = vadd.f32 %v1417, %v1387
    %v1419 = vadd.f32 %v1418, %v1388
    %v1420 = vadd.f32 %v1419, %v1389
    %v1421 = vadd.f32 %v1420, %v1390
    %v1422 = vadd.f32 %v1421, %v1391
    %v1423 = vadd.f32 %v1422, %v1392
    %v1424 = vadd.f32 %v1423, %v1393
    %v1425 = vadd.f32 %v1424, %v1394
    %v1426 = vadd.f32 %v1425, %v1395
    %v1427 = vadd.f32 %v1426, %v1396
    %v1428 = vadd.f32 %v1427, %v1397
    %v1429 = vadd.f32 %v1428, %v1398
    %v1430 = vadd.f32 %v1429, %v1399
    %v1431 = vadd.f32 %v1430, %v1400
    %v1432 = vadd.f32 %v1431, %v1401
    %v1433 = vadd.f32 %v1432, %v1402
    %v1434 = vadd.f32 %v1433, %v1403
    %v1435 = vadd.f32 %v1434, %v1404
    %v1436 = vadd.f32 %v1435, %v1405
    %v1437 = vadd.f32 %v1436, %v1406
    %v1438 = vadd.f32 %v1437, %v1407
    %v1439 = vadd.f32 %v1438, %v1408
    %v1440 = vrot.slane %v1439, 4
    %v1441 = vadd.f32 %v1439, %v1440
    %v1442 = vrot.slane %v1441, 2
    %v1443 = vadd.f32 %v1441, %v1442
    %v1444 = vrot.slane %v1443, 1
    %v1445 = vadd.f32 %v1443, %v1444
    %v1446 = vld [vmem:[#allocation2] sm:$0x1]
    %1448 = vset.pattern.permute.xlu0 0
    %1449 = vperm.xlu0 %1448, %v1446
    %v1450 = vpop.permute.xlu0 %1449
    %v1452 = vlaneseq
    %v1453 = vshrl.u32 %v1452, 7
    %v1454 = vsub.s32 0, %v1453
    %v1455 = vrot.slane %v1450, %v1454
    %v1456 = vadd.f32 %v1445, %v1455
    %1457 = vst [vmem:[#allocation3] sm:$0x1] %v1456
    // Predicated region
    $region30: #{tpu_custom_call.1} parent=1 // pred_check
      _
    $region31: #{tpu_custom_call.1} parent=1 // pred_check_branch
      %1459 = sbr.rel (0) target = $region33
    $region32: #{tpu_custom_call.1} parent=1 // pred_region
      %s1461 = ssub.s32 16, 16
      %1462 = vsyncadd [#allocation4], %s1461
      %s1464 = sshll.u32 [#allocation3], 4
      %s1465 = int_to_ptr.vmem [resolvable:$true] %s1464
      %1467 = dma.vmem_to_hbm [thread:$0]  %s1465, 16, %s7, [#allocation4]
    $region33: #{tpu_custom_call.1} parent=1 // pred_fallthru
      _
    // Predicated region
    $region34: #{tpu_custom_call.1} parent=1 // pred_check
      _
    $region35: #{tpu_custom_call.1} parent=1 // pred_check_branch
      %1469 = sbr.rel (0) target = $region37
    $region36: #{tpu_custom_call.1} parent=1 // pred_region
      %1470 = dma.done [#allocation4], 16
    $region37: #{tpu_custom_call.1} parent=1 // pred_fallthru
      _
    %1471 = vsyncpa [#allocation4], 1

</llo_original>
